<compile_context>
chip_gen: v7x
topology: tpu7x:2x2x1
jax: 0.10.0
libtpu: 0.0.40
codegen_flags: <defaults>
</compile_context>

<pallas_src>
import functools

import jax
import jax.numpy as jnp
import numpy as np
from jax.experimental import pallas as pl
from jax.experimental.pallas import tpu as pltpu


def _round_up(x: int, m: int) -> int:
    return ((x + m - 1) // m) * m


# --------------------------------------------------------------------------
# Path 1: one-hot @ table matmul (MXU), seq-tiled, reduction over levels.
# --------------------------------------------------------------------------
def _sum_kernel(ids_ref, tbl_ref, o_ref, *, n_tok_pad, accumulate):
    # grid = (seq_tiles, L);  l (levels) is the reduction axis (last).
    l = pl.program_id(1)

    ids = ids_ref[l, :]                                            # (tile_s,)
    # Hoisted (1, n_tokens) iota; compare broadcasts against ids[:, None].
    tok = jax.lax.broadcasted_iota(jnp.int32, (1, n_tok_pad), 1)
    onehot = (ids[:, None] == tok).astype(jnp.float32)             # (tile_s, n_tok)
    # Exact row gather on the MXU (f32 accumulation, no precision change).
    part = jnp.dot(onehot, tbl_ref[0], preferred_element_type=jnp.float32)

    if accumulate:
        @pl.when(l == 0)
        def _():
            o_ref[...] = part                  # first level: direct store

        @pl.when(l > 0)
        def _():
            o_ref[...] += part                 # later levels: accumulate
    else:
        o_ref[...] = part                      # single level: no RMW at all


def _pick_tile_s(seq, n_tok_pad, d_pad):
    """Largest lane-dense seq tile that keeps the matmul-path blocks in VMEM."""
    seq8 = _round_up(seq, 8)
    budget = 56 * 2**20
    for cap in (512, 256, 128):
        tile = min(cap, seq8)                  # tile == seq8 -> full-extent block
        need = (2 * n_tok_pad * d_pad * 4      # table block, double buffered
                + tile * n_tok_pad * 4         # one-hot intermediate
                + 2 * tile * d_pad * 4)        # output block, double buffered
        if need <= budget:
            return tile
    return min(128, seq8)


def _matmul_call(idx, tables, level_start, tile_s):
    L, seq_pad = idx.shape
    _, n_tok_pad, d_pad = tables.shape
    num_s = seq_pad // tile_s

    need = (2 * n_tok_pad * d_pad * 4          # table block, double buffered
            + 2 * L * tile_s * 4               # ids block, double buffered
            + 2 * tile_s * d_pad * 4           # output block, double buffered
            + tile_s * n_tok_pad * 4)          # one-hot intermediate
    vmem_limit = int(min(max(2 * need, 32 * 2**20), 64 * 2**20))

    kernel = functools.partial(_sum_kernel, n_tok_pad=n_tok_pad,
                               accumulate=(L > 1))
    return pl.pallas_call(
        kernel,
        out_shape=jax.ShapeDtypeStruct((seq_pad, d_pad), tables.dtype),
        grid_spec=pltpu.PrefetchScalarGridSpec(
            num_scalar_prefetch=0,
            grid=(num_s, L),
            in_specs=[
                # full (small) index grid resident; lane dim = seq tile
                pl.BlockSpec((L, tile_s), lambda s, l: (0, s)),
                # one embedding table per level; offset baked into index_map
                pl.BlockSpec((1, n_tok_pad, d_pad),
                             lambda s, l: (l + level_start, 0, 0)),
            ],
            out_specs=pl.BlockSpec((tile_s, d_pad), lambda s, l: (s, 0)),
        ),
        compiler_params=pltpu.CompilerParams(
            dimension_semantics=("parallel", "arbitrary"),
            vmem_limit_bytes=vmem_limit),
    )(idx, tables)


# --------------------------------------------------------------------------
# Path 2: short-sequence row gather via manual DMA from the HBM table.
# Only the seq rows actually needed per level are moved (decode-style calls).
# --------------------------------------------------------------------------
def _gather_kernel(ids_ref, tbl_hbm, o_ref, buf_ref, sem,
                   *, seq_pad, offset, accumulate):
    l = pl.program_id(0)
    lvl = l + offset

    # Issue all row DMAs for this level (overlapped), then wait for all.
    for s in range(seq_pad):
        row = ids_ref[l, s]
        pltpu.make_async_copy(
            tbl_hbm.at[lvl, pl.ds(row, 1)],      # (1, d_pad) HBM row
            buf_ref.at[pl.ds(s, 1)],             # (1, d_pad) VMEM slot
            sem,
        ).start()
    for s in range(seq_pad):
        pltpu.make_async_copy(
            tbl_hbm.at[lvl, pl.ds(0, 1)],        # same-shaped descriptor
            buf_ref.at[pl.ds(s, 1)],
            sem,
        ).wait()

    if accumulate:
        @pl.when(l == 0)
        def _():
            o_ref[...] = buf_ref[...]

        @pl.when(l > 0)
        def _():
            o_ref[...] += buf_ref[...]
    else:
        o_ref[...] = buf_ref[...]


def _gather_call(idx, tables, level_start):
    L, seq_pad = idx.shape
    _, n_tok_pad, d_pad = tables.shape

    need = 3 * seq_pad * d_pad * 4
    vmem_limit = int(min(max(4 * need, 32 * 2**20), 64 * 2**20))

    kernel = functools.partial(_gather_kernel, seq_pad=seq_pad,
                               offset=level_start, accumulate=(L > 1))
    return pl.pallas_call(
        kernel,
        out_shape=jax.ShapeDtypeStruct((seq_pad, d_pad), tables.dtype),
        grid_spec=pltpu.PrefetchScalarGridSpec(
            num_scalar_prefetch=1,                       # ids -> SMEM
            grid=(L,),
            in_specs=[pl.BlockSpec(memory_space=pl.ANY)],  # table stays in HBM
            out_specs=pl.BlockSpec((seq_pad, d_pad), lambda l, ids: (0, 0)),
            scratch_shapes=[
                pltpu.VMEM((seq_pad, d_pad), tables.dtype),
                pltpu.SemaphoreType.DMA(()),
            ],
        ),
        compiler_params=pltpu.CompilerParams(
            dimension_semantics=("arbitrary",),
            vmem_limit_bytes=vmem_limit),
    )(idx, tables)


# --------------------------------------------------------------------------
# Dispatcher
# --------------------------------------------------------------------------
@functools.partial(jax.jit, static_argnames=("level_start", "token_dim", "path"))
def _embedding_lookup(idx, tables, *, level_start, token_dim, path):
    """idx: (L, seq) int32; tables: (L_total, n_tok_pad, d_pad) f32."""
    L, seq = idx.shape
    _, n_tok_pad, d_pad = tables.shape
    if path == "gather":
        seq_pad = _round_up(seq, 8)
        idx_p = jnp.pad(idx, ((0, 0), (0, seq_pad - seq)))
        out = _gather_call(idx_p, tables, level_start)
    else:
        tile_s = _pick_tile_s(seq, n_tok_pad, d_pad)
        seq_pad = _round_up(seq, tile_s)
        idx_p = jnp.pad(idx, ((0, 0), (0, seq_pad - seq)))
        out = _matmul_call(idx_p, tables, level_start, tile_s)
    return out[:seq, :token_dim]


class AudioEmbedding:
    """JAX/Pallas port of vall_e AudioEmbedding (external_mode=None path)."""

    def __init__(self, l_tokens, token_dim, sums=True, key=None):
        if key is None:
            key = jax.random.PRNGKey(0)
        keys = jax.random.split(key, len(l_tokens))
        # nn.Embedding default init: N(0, 1).  Keep unpadded weights for the
        # pure-JAX reference.
        self.weights = [
            jax.random.normal(k, (n, token_dim), dtype=jnp.float32)
            for k, n in zip(keys, l_tokens)
        ]
        self.sums = sums
        self.token_dim = token_dim
        # Pre-stack ONCE (padded vocab rows / feature cols are zero, so padded
        # rows can never contribute to the one-hot matmul).
        self.n_tok_pad = _round_up(max(l_tokens), 128)
        self.d_pad = _round_up(token_dim, 128)
        self.tables = jnp.stack([
            jnp.pad(w, ((0, self.n_tok_pad - w.shape[0]),
                        (0, self.d_pad - token_dim)))
            for w in self.weights
        ])                                  # (L_total, n_tok_pad, d_pad)

    def __call__(self, xi: jax.Array, offset: int = 0, path=None) -> jax.Array:
        xi = jnp.asarray(xi)
        if xi.ndim == 1:
            idx = xi[None, :].astype(jnp.int32)                     # (1, seq)
            level_start = offset
        else:
            quant_level = xi.shape[-1] - 1
            if self.sums and quant_level > 0:
                idx = jnp.transpose(xi[:, :quant_level]).astype(jnp.int32)
                level_start = offset                                # (L, seq)
            else:
                k = quant_level
                idx = xi[:, k][None, :].astype(jnp.int32)           # (1, seq)
                level_start = k + offset

        if path is None:
            seq_pad = _round_up(idx.shape[1], 8)
            path = ("gather"
                    if seq_pad <= 128 and seq_pad * 8 <= self.n_tok_pad
                    else "matmul")
        return _embedding_lookup(idx, self.tables,
                                 level_start=level_start,
                                 token_dim=self.token_dim, path=path)

    # pure-JAX reference (for verification)
    def reference(self, xi: jax.Array, offset: int = 0) -> jax.Array:
        if xi.ndim == 1:
            return self.weights[offset][xi]
        quant_level = xi.shape[-1] - 1
        if self.sums and quant_level > 0:
            return sum(self.weights[k + offset][xi[:, k]]
                       for k in range(quant_level))
        k = quant_level
        return self.weights[k + offset][xi[:, k]]


if __name__ == "__main__":
    key = jax.random.PRNGKey(0)
    token_dim = 32
    # heterogeneous per-level vocab sizes (exercises the zero-padded stacking)
    l_tokens = [256, 200, 192, 160]
    seq = 8

    module = AudioEmbedding(l_tokens, token_dim, sums=True, key=key)

    # 2-D (multi-quant-level) input: (seq, n_levels), ids valid per level.
    cols = [jax.random.randint(jax.random.PRNGKey(10 + i), (seq,), 0, n,
                               dtype=jnp.int32)
            for i, n in enumerate(l_tokens)]
    xi_2d = jnp.stack(cols, axis=-1)

    ref_2d = module.reference(xi_2d)
    for path in ("gather", "matmul", None):
        out = jax.block_until_ready(module(xi_2d, path=path))
        assert out.shape == (seq, token_dim)
        np.testing.assert_allclose(np.asarray(out), np.asarray(ref_2d),
                                   atol=1e-5, rtol=1e-5)

    # 1-D input: (seq,), test offsets 0 and 1 (offset is baked into index_map)
    xi_1d = jax.random.randint(jax.random.PRNGKey(2), (seq,), 0,
                               min(l_tokens), dtype=jnp.int32)
    for offset in (0, 1):
        ref_1d = module.reference(xi_1d, offset)
        for path in ("gather", "matmul"):
            out = jax.block_until_ready(module(xi_1d, offset=offset, path=path))
            assert out.shape == (seq, token_dim)
            np.testing.assert_allclose(np.asarray(out), np.asarray(ref_1d),
                                       atol=1e-5, rtol=1e-5)

    # sums=False: only the last quant level is embedded
    module_ns = AudioEmbedding(l_tokens, token_dim, sums=False,
                               key=jax.random.PRNGKey(3))
    out_ns = jax.block_until_ready(module_ns(xi_2d))
    np.testing.assert_allclose(np.asarray(out_ns),
                               np.asarray(module_ns.reference(xi_2d)),
                               atol=1e-5, rtol=1e-5)

    # longer sequence to exercise the seq-tiled matmul path
    seq_long = 300
    cols_long = [jax.random.randint(jax.random.PRNGKey(20 + i), (seq_long,), 0, n,
                                    dtype=jnp.int32)
                 for i, n in enumerate(l_tokens)]
    xi_long = jnp.stack(cols_long, axis=-1)
    out_long = jax.block_until_ready(module(xi_long, path="matmul"))
    np.testing.assert_allclose(np.asarray(out_long),
                               np.asarray(module.reference(xi_long)),
                               atol=1e-4, rtol=1e-5)

    # TODO(synk): external_mode ('inclusive'/'exclusive') depends on
    # encode_as_embedding / ml.resize_weight which are not part of this module;
    # only the default internal_forward path is implemented.

    print("KERNEL_OK")
</pallas_src>

<mosaic_0001>
module attributes {stable_mosaic.version = 11 : i64} {
  func.func @_gather_kernel(%arg0: i32, %arg1: memref<3x8xi32, #tpu.memory_space<smem>>, %arg2: memref<4x256x128xf32, #tpu.memory_space<any>>, %arg3: memref<8x128xf32, #tpu.memory_space<vmem>>, %arg4: memref<8x128xf32, #tpu.memory_space<vmem>>, %arg5: memref<!tpu.dma_semaphore, #tpu.memory_space<semaphore_mem>>) attributes {dimension_semantics = [#tpu.dimension_semantics<arbitrary>], iteration_bounds = array<i64: 3>, scalar_prefetch = 1 : i64, scratch_operands = 2 : i64, tpu.core_type = #tpu.core_type<tc>, window_params = [{}, {pipeline_mode = #tpu.pipeline_mode<synchronous>, transform_indices = @transform_1, window_bounds = array<i64: 8, 128>}]} {
    %c0_i32 = arith.constant 0 : i32
    %0 = arith.addi %arg0, %c0_i32 : i32
    %1 = arith.index_cast %arg0 : i32 to index
    %c0 = arith.constant 0 : index
    %2 = memref.load %arg1[%1, %c0] : memref<3x8xi32, #tpu.memory_space<smem>>
    %c0_i32_0 = arith.constant 0 : i32
    %3 = tpu.memref_slice %arg2[%0, %2, %c0_i32_0] : memref<4x256x128xf32, #tpu.memory_space<any>> -> memref<1x1x128xf32, #tpu.memory_space<any>>
    %4 = tpu.memref_squeeze %3 : memref<1x1x128xf32, #tpu.memory_space<any>> -> memref<1x128xf32, #tpu.memory_space<any>>
    %c0_i32_1 = arith.constant 0 : i32
    %c0_i32_2 = arith.constant 0 : i32
    %5 = tpu.memref_slice %arg4[%c0_i32_1, %c0_i32_2] : memref<8x128xf32, #tpu.memory_space<vmem>> -> memref<1x128xf32, #tpu.memory_space<vmem>>
    tpu.enqueue_dma source(%4 : memref<1x128xf32, #tpu.memory_space<any>>) target(%5 : memref<1x128xf32, #tpu.memory_space<vmem>>) target_semaphore(%arg5 : memref<!tpu.dma_semaphore, #tpu.memory_space<semaphore_mem>>)
    %6 = arith.index_cast %arg0 : i32 to index
    %c1 = arith.constant 1 : index
    %7 = memref.load %arg1[%6, %c1] : memref<3x8xi32, #tpu.memory_space<smem>>
    %c0_i32_3 = arith.constant 0 : i32
    %8 = tpu.memref_slice %arg2[%0, %7, %c0_i32_3] : memref<4x256x128xf32, #tpu.memory_space<any>> -> memref<1x1x128xf32, #tpu.memory_space<any>>
    %9 = tpu.memref_squeeze %8 : memref<1x1x128xf32, #tpu.memory_space<any>> -> memref<1x128xf32, #tpu.memory_space<any>>
    %c1_i32 = arith.constant 1 : i32
    %c0_i32_4 = arith.constant 0 : i32
    %10 = tpu.memref_slice %arg4[%c1_i32, %c0_i32_4] : memref<8x128xf32, #tpu.memory_space<vmem>> -> memref<1x128xf32, #tpu.memory_space<vmem>>
    tpu.enqueue_dma source(%9 : memref<1x128xf32, #tpu.memory_space<any>>) target(%10 : memref<1x128xf32, #tpu.memory_space<vmem>>) target_semaphore(%arg5 : memref<!tpu.dma_semaphore, #tpu.memory_space<semaphore_mem>>)
    %11 = arith.index_cast %arg0 : i32 to index
    %c2 = arith.constant 2 : index
    %12 = memref.load %arg1[%11, %c2] : memref<3x8xi32, #tpu.memory_space<smem>>
    %c0_i32_5 = arith.constant 0 : i32
    %13 = tpu.memref_slice %arg2[%0, %12, %c0_i32_5] : memref<4x256x128xf32, #tpu.memory_space<any>> -> memref<1x1x128xf32, #tpu.memory_space<any>>
    %14 = tpu.memref_squeeze %13 : memref<1x1x128xf32, #tpu.memory_space<any>> -> memref<1x128xf32, #tpu.memory_space<any>>
    %c2_i32 = arith.constant 2 : i32
    %c0_i32_6 = arith.constant 0 : i32
    %15 = tpu.memref_slice %arg4[%c2_i32, %c0_i32_6] : memref<8x128xf32, #tpu.memory_space<vmem>> -> memref<1x128xf32, #tpu.memory_space<vmem>>
    tpu.enqueue_dma source(%14 : memref<1x128xf32, #tpu.memory_space<any>>) target(%15 : memref<1x128xf32, #tpu.memory_space<vmem>>) target_semaphore(%arg5 : memref<!tpu.dma_semaphore, #tpu.memory_space<semaphore_mem>>)
    %16 = arith.index_cast %arg0 : i32 to index
    %c3 = arith.constant 3 : index
    %17 = memref.load %arg1[%16, %c3] : memref<3x8xi32, #tpu.memory_space<smem>>
    %c0_i32_7 = arith.constant 0 : i32
    %18 = tpu.memref_slice %arg2[%0, %17, %c0_i32_7] : memref<4x256x128xf32, #tpu.memory_space<any>> -> memref<1x1x128xf32, #tpu.memory_space<any>>
    %19 = tpu.memref_squeeze %18 : memref<1x1x128xf32, #tpu.memory_space<any>> -> memref<1x128xf32, #tpu.memory_space<any>>
    %c3_i32 = arith.constant 3 : i32
    %c0_i32_8 = arith.constant 0 : i32
    %20 = tpu.memref_slice %arg4[%c3_i32, %c0_i32_8] : memref<8x128xf32, #tpu.memory_space<vmem>> -> memref<1x128xf32, #tpu.memory_space<vmem>>
    tpu.enqueue_dma source(%19 : memref<1x128xf32, #tpu.memory_space<any>>) target(%20 : memref<1x128xf32, #tpu.memory_space<vmem>>) target_semaphore(%arg5 : memref<!tpu.dma_semaphore, #tpu.memory_space<semaphore_mem>>)
    %21 = arith.index_cast %arg0 : i32 to index
    %c4 = arith.constant 4 : index
    %22 = memref.load %arg1[%21, %c4] : memref<3x8xi32, #tpu.memory_space<smem>>
    %c0_i32_9 = arith.constant 0 : i32
    %23 = tpu.memref_slice %arg2[%0, %22, %c0_i32_9] : memref<4x256x128xf32, #tpu.memory_space<any>> -> memref<1x1x128xf32, #tpu.memory_space<any>>
    %24 = tpu.memref_squeeze %23 : memref<1x1x128xf32, #tpu.memory_space<any>> -> memref<1x128xf32, #tpu.memory_space<any>>
    %c4_i32 = arith.constant 4 : i32
    %c0_i32_10 = arith.constant 0 : i32
    %25 = tpu.memref_slice %arg4[%c4_i32, %c0_i32_10] : memref<8x128xf32, #tpu.memory_space<vmem>> -> memref<1x128xf32, #tpu.memory_space<vmem>>
    tpu.enqueue_dma source(%24 : memref<1x128xf32, #tpu.memory_space<any>>) target(%25 : memref<1x128xf32, #tpu.memory_space<vmem>>) target_semaphore(%arg5 : memref<!tpu.dma_semaphore, #tpu.memory_space<semaphore_mem>>)
    %26 = arith.index_cast %arg0 : i32 to index
    %c5 = arith.constant 5 : index
    %27 = memref.load %arg1[%26, %c5] : memref<3x8xi32, #tpu.memory_space<smem>>
    %c0_i32_11 = arith.constant 0 : i32
    %28 = tpu.memref_slice %arg2[%0, %27, %c0_i32_11] : memref<4x256x128xf32, #tpu.memory_space<any>> -> memref<1x1x128xf32, #tpu.memory_space<any>>
    %29 = tpu.memref_squeeze %28 : memref<1x1x128xf32, #tpu.memory_space<any>> -> memref<1x128xf32, #tpu.memory_space<any>>
    %c5_i32 = arith.constant 5 : i32
    %c0_i32_12 = arith.constant 0 : i32
    %30 = tpu.memref_slice %arg4[%c5_i32, %c0_i32_12] : memref<8x128xf32, #tpu.memory_space<vmem>> -> memref<1x128xf32, #tpu.memory_space<vmem>>
    tpu.enqueue_dma source(%29 : memref<1x128xf32, #tpu.memory_space<any>>) target(%30 : memref<1x128xf32, #tpu.memory_space<vmem>>) target_semaphore(%arg5 : memref<!tpu.dma_semaphore, #tpu.memory_space<semaphore_mem>>)
    %31 = arith.index_cast %arg0 : i32 to index
    %c6 = arith.constant 6 : index
    %32 = memref.load %arg1[%31, %c6] : memref<3x8xi32, #tpu.memory_space<smem>>
    %c0_i32_13 = arith.constant 0 : i32
    %33 = tpu.memref_slice %arg2[%0, %32, %c0_i32_13] : memref<4x256x128xf32, #tpu.memory_space<any>> -> memref<1x1x128xf32, #tpu.memory_space<any>>
    %34 = tpu.memref_squeeze %33 : memref<1x1x128xf32, #tpu.memory_space<any>> -> memref<1x128xf32, #tpu.memory_space<any>>
    %c6_i32 = arith.constant 6 : i32
    %c0_i32_14 = arith.constant 0 : i32
    %35 = tpu.memref_slice %arg4[%c6_i32, %c0_i32_14] : memref<8x128xf32, #tpu.memory_space<vmem>> -> memref<1x128xf32, #tpu.memory_space<vmem>>
    tpu.enqueue_dma source(%34 : memref<1x128xf32, #tpu.memory_space<any>>) target(%35 : memref<1x128xf32, #tpu.memory_space<vmem>>) target_semaphore(%arg5 : memref<!tpu.dma_semaphore, #tpu.memory_space<semaphore_mem>>)
    %36 = arith.index_cast %arg0 : i32 to index
    %c7 = arith.constant 7 : index
    %37 = memref.load %arg1[%36, %c7] : memref<3x8xi32, #tpu.memory_space<smem>>
    %c0_i32_15 = arith.constant 0 : i32
    %38 = tpu.memref_slice %arg2[%0, %37, %c0_i32_15] : memref<4x256x128xf32, #tpu.memory_space<any>> -> memref<1x1x128xf32, #tpu.memory_space<any>>
    %39 = tpu.memref_squeeze %38 : memref<1x1x128xf32, #tpu.memory_space<any>> -> memref<1x128xf32, #tpu.memory_space<any>>
    %c7_i32 = arith.constant 7 : i32
    %c0_i32_16 = arith.constant 0 : i32
    %40 = tpu.memref_slice %arg4[%c7_i32, %c0_i32_16] : memref<8x128xf32, #tpu.memory_space<vmem>> -> memref<1x128xf32, #tpu.memory_space<vmem>>
    tpu.enqueue_dma source(%39 : memref<1x128xf32, #tpu.memory_space<any>>) target(%40 : memref<1x128xf32, #tpu.memory_space<vmem>>) target_semaphore(%arg5 : memref<!tpu.dma_semaphore, #tpu.memory_space<semaphore_mem>>)
    %c0_i32_17 = arith.constant 0 : i32
    %c0_i32_18 = arith.constant 0 : i32
    %41 = tpu.memref_slice %arg2[%0, %c0_i32_17, %c0_i32_18] : memref<4x256x128xf32, #tpu.memory_space<any>> -> memref<1x1x128xf32, #tpu.memory_space<any>>
    %42 = tpu.memref_squeeze %41 : memref<1x1x128xf32, #tpu.memory_space<any>> -> memref<1x128xf32, #tpu.memory_space<any>>
    %c0_i32_19 = arith.constant 0 : i32
    %c0_i32_20 = arith.constant 0 : i32
    %43 = tpu.memref_slice %arg4[%c0_i32_19, %c0_i32_20] : memref<8x128xf32, #tpu.memory_space<vmem>> -> memref<1x128xf32, #tpu.memory_space<vmem>>
    tpu.wait_dma2 semaphore(%arg5 : memref<!tpu.dma_semaphore, #tpu.memory_space<semaphore_mem>>) src(%42 : memref<1x128xf32, #tpu.memory_space<any>>) dst(%43 : memref<1x128xf32, #tpu.memory_space<vmem>>)
    %c0_i32_21 = arith.constant 0 : i32
    %c0_i32_22 = arith.constant 0 : i32
    %44 = tpu.memref_slice %arg2[%0, %c0_i32_21, %c0_i32_22] : memref<4x256x128xf32, #tpu.memory_space<any>> -> memref<1x1x128xf32, #tpu.memory_space<any>>
    %45 = tpu.memref_squeeze %44 : memref<1x1x128xf32, #tpu.memory_space<any>> -> memref<1x128xf32, #tpu.memory_space<any>>
    %c1_i32_23 = arith.constant 1 : i32
    %c0_i32_24 = arith.constant 0 : i32
    %46 = tpu.memref_slice %arg4[%c1_i32_23, %c0_i32_24] : memref<8x128xf32, #tpu.memory_space<vmem>> -> memref<1x128xf32, #tpu.memory_space<vmem>>
    tpu.wait_dma2 semaphore(%arg5 : memref<!tpu.dma_semaphore, #tpu.memory_space<semaphore_mem>>) src(%45 : memref<1x128xf32, #tpu.memory_space<any>>) dst(%46 : memref<1x128xf32, #tpu.memory_space<vmem>>)
    %c0_i32_25 = arith.constant 0 : i32
    %c0_i32_26 = arith.constant 0 : i32
    %47 = tpu.memref_slice %arg2[%0, %c0_i32_25, %c0_i32_26] : memref<4x256x128xf32, #tpu.memory_space<any>> -> memref<1x1x128xf32, #tpu.memory_space<any>>
    %48 = tpu.memref_squeeze %47 : memref<1x1x128xf32, #tpu.memory_space<any>> -> memref<1x128xf32, #tpu.memory_space<any>>
    %c2_i32_27 = arith.constant 2 : i32
    %c0_i32_28 = arith.constant 0 : i32
    %49 = tpu.memref_slice %arg4[%c2_i32_27, %c0_i32_28] : memref<8x128xf32, #tpu.memory_space<vmem>> -> memref<1x128xf32, #tpu.memory_space<vmem>>
    tpu.wait_dma2 semaphore(%arg5 : memref<!tpu.dma_semaphore, #tpu.memory_space<semaphore_mem>>) src(%48 : memref<1x128xf32, #tpu.memory_space<any>>) dst(%49 : memref<1x128xf32, #tpu.memory_space<vmem>>)
    %c0_i32_29 = arith.constant 0 : i32
    %c0_i32_30 = arith.constant 0 : i32
    %50 = tpu.memref_slice %arg2[%0, %c0_i32_29, %c0_i32_30] : memref<4x256x128xf32, #tpu.memory_space<any>> -> memref<1x1x128xf32, #tpu.memory_space<any>>
    %51 = tpu.memref_squeeze %50 : memref<1x1x128xf32, #tpu.memory_space<any>> -> memref<1x128xf32, #tpu.memory_space<any>>
    %c3_i32_31 = arith.constant 3 : i32
    %c0_i32_32 = arith.constant 0 : i32
    %52 = tpu.memref_slice %arg4[%c3_i32_31, %c0_i32_32] : memref<8x128xf32, #tpu.memory_space<vmem>> -> memref<1x128xf32, #tpu.memory_space<vmem>>
    tpu.wait_dma2 semaphore(%arg5 : memref<!tpu.dma_semaphore, #tpu.memory_space<semaphore_mem>>) src(%51 : memref<1x128xf32, #tpu.memory_space<any>>) dst(%52 : memref<1x128xf32, #tpu.memory_space<vmem>>)
    %c0_i32_33 = arith.constant 0 : i32
    %c0_i32_34 = arith.constant 0 : i32
    %53 = tpu.memref_slice %arg2[%0, %c0_i32_33, %c0_i32_34] : memref<4x256x128xf32, #tpu.memory_space<any>> -> memref<1x1x128xf32, #tpu.memory_space<any>>
    %54 = tpu.memref_squeeze %53 : memref<1x1x128xf32, #tpu.memory_space<any>> -> memref<1x128xf32, #tpu.memory_space<any>>
    %c4_i32_35 = arith.constant 4 : i32
    %c0_i32_36 = arith.constant 0 : i32
    %55 = tpu.memref_slice %arg4[%c4_i32_35, %c0_i32_36] : memref<8x128xf32, #tpu.memory_space<vmem>> -> memref<1x128xf32, #tpu.memory_space<vmem>>
    tpu.wait_dma2 semaphore(%arg5 : memref<!tpu.dma_semaphore, #tpu.memory_space<semaphore_mem>>) src(%54 : memref<1x128xf32, #tpu.memory_space<any>>) dst(%55 : memref<1x128xf32, #tpu.memory_space<vmem>>)
    %c0_i32_37 = arith.constant 0 : i32
    %c0_i32_38 = arith.constant 0 : i32
    %56 = tpu.memref_slice %arg2[%0, %c0_i32_37, %c0_i32_38] : memref<4x256x128xf32, #tpu.memory_space<any>> -> memref<1x1x128xf32, #tpu.memory_space<any>>
    %57 = tpu.memref_squeeze %56 : memref<1x1x128xf32, #tpu.memory_space<any>> -> memref<1x128xf32, #tpu.memory_space<any>>
    %c5_i32_39 = arith.constant 5 : i32
    %c0_i32_40 = arith.constant 0 : i32
    %58 = tpu.memref_slice %arg4[%c5_i32_39, %c0_i32_40] : memref<8x128xf32, #tpu.memory_space<vmem>> -> memref<1x128xf32, #tpu.memory_space<vmem>>
    tpu.wait_dma2 semaphore(%arg5 : memref<!tpu.dma_semaphore, #tpu.memory_space<semaphore_mem>>) src(%57 : memref<1x128xf32, #tpu.memory_space<any>>) dst(%58 : memref<1x128xf32, #tpu.memory_space<vmem>>)
    %c0_i32_41 = arith.constant 0 : i32
    %c0_i32_42 = arith.constant 0 : i32
    %59 = tpu.memref_slice %arg2[%0, %c0_i32_41, %c0_i32_42] : memref<4x256x128xf32, #tpu.memory_space<any>> -> memref<1x1x128xf32, #tpu.memory_space<any>>
    %60 = tpu.memref_squeeze %59 : memref<1x1x128xf32, #tpu.memory_space<any>> -> memref<1x128xf32, #tpu.memory_space<any>>
    %c6_i32_43 = arith.constant 6 : i32
    %c0_i32_44 = arith.constant 0 : i32
    %61 = tpu.memref_slice %arg4[%c6_i32_43, %c0_i32_44] : memref<8x128xf32, #tpu.memory_space<vmem>> -> memref<1x128xf32, #tpu.memory_space<vmem>>
    tpu.wait_dma2 semaphore(%arg5 : memref<!tpu.dma_semaphore, #tpu.memory_space<semaphore_mem>>) src(%60 : memref<1x128xf32, #tpu.memory_space<any>>) dst(%61 : memref<1x128xf32, #tpu.memory_space<vmem>>)
    %c0_i32_45 = arith.constant 0 : i32
    %c0_i32_46 = arith.constant 0 : i32
    %62 = tpu.memref_slice %arg2[%0, %c0_i32_45, %c0_i32_46] : memref<4x256x128xf32, #tpu.memory_space<any>> -> memref<1x1x128xf32, #tpu.memory_space<any>>
    %63 = tpu.memref_squeeze %62 : memref<1x1x128xf32, #tpu.memory_space<any>> -> memref<1x128xf32, #tpu.memory_space<any>>
    %c7_i32_47 = arith.constant 7 : i32
    %c0_i32_48 = arith.constant 0 : i32
    %64 = tpu.memref_slice %arg4[%c7_i32_47, %c0_i32_48] : memref<8x128xf32, #tpu.memory_space<vmem>> -> memref<1x128xf32, #tpu.memory_space<vmem>>
    tpu.wait_dma2 semaphore(%arg5 : memref<!tpu.dma_semaphore, #tpu.memory_space<semaphore_mem>>) src(%63 : memref<1x128xf32, #tpu.memory_space<any>>) dst(%64 : memref<1x128xf32, #tpu.memory_space<vmem>>)
    %c0_i32_49 = arith.constant 0 : i32
    %65 = arith.cmpi eq, %arg0, %c0_i32_49 : i32
    %66 = arith.extui %65 : i1 to i32
    %c0_i32_50 = arith.constant 0 : i32
    %67 = arith.cmpi ne, %66, %c0_i32_50 : i32
    scf.if %67 {
      %c0_53 = arith.constant 0 : index
      %c0_54 = arith.constant 0 : index
      %71 = vector.load %arg4[%c0_53, %c0_54] : memref<8x128xf32, #tpu.memory_space<vmem>>, vector<8x128xf32>
      %c0_55 = arith.constant 0 : index
      %c0_56 = arith.constant 0 : index
      %72 = vector.load %arg3[%c0_55, %c0_56] : memref<8x128xf32, #tpu.memory_space<vmem>>, vector<8x128xf32>
      tpu.vector_store %arg3[%c0_55, %c0_56], %71 {strides = array<i32>} : memref<8x128xf32, #tpu.memory_space<vmem>>, vector<8x128xf32>,
    } else {
    }
    %c0_i32_51 = arith.constant 0 : i32
    %68 = arith.cmpi sgt, %arg0, %c0_i32_51 : i32
    %69 = arith.extui %68 : i1 to i32
    %c0_i32_52 = arith.constant 0 : i32
    %70 = arith.cmpi ne, %69, %c0_i32_52 : i32
    scf.if %70 {
      %c0_53 = arith.constant 0 : index
      %c0_54 = arith.constant 0 : index
      %71 = vector.load %arg3[%c0_53, %c0_54] : memref<8x128xf32, #tpu.memory_space<vmem>>, vector<8x128xf32>
      %c0_55 = arith.constant 0 : index
      %c0_56 = arith.constant 0 : index
      %72 = vector.load %arg4[%c0_55, %c0_56] : memref<8x128xf32, #tpu.memory_space<vmem>>, vector<8x128xf32>
      %73 = arith.addf %71, %72 : vector<8x128xf32>
      %c0_57 = arith.constant 0 : index
      %c0_58 = arith.constant 0 : index
      %74 = vector.load %arg3[%c0_57, %c0_58] : memref<8x128xf32, #tpu.memory_space<vmem>>, vector<8x128xf32>
      tpu.vector_store %arg3[%c0_57, %c0_58], %73 {strides = array<i32>} : memref<8x128xf32, #tpu.memory_space<vmem>>, vector<8x128xf32>,
    } else {
    }
    return
  }
  func.func @transform_1(%arg0: i32, %arg1: memref<3x8xi32, #tpu.memory_space<smem>>) -> (i32, i32) {
    %c0_i32 = arith.constant 0 : i32
    %c0_i32_0 = arith.constant 0 : i32
    %c0_i32_1 = arith.constant 0 : i32
    return %c0_i32, %c0_i32_0 : i32, i32
  }
}

</mosaic_0001>

<llo_original>
// kernel: _embedding_lookup.1
$region0: #{_embedding_lookup.1}
  #allocation0 [shape = 'u32[]', space=smem, size = 0x4, offset = 0x4, fixed_abs, tag = 'smem constant byte address 0x4 - core index']
  #allocation1 [shape = 'u32[144,128]{1,0:T(1,128)}', space=vmem, size = 0x12000, scoped, tag = 'internal scratch']
  #allocation2 [shape = 'f32[8,128]{1,0:T(8,128)}', space=vmem, size = 0x1000, scoped, tag = 'scratch operand']
  #allocation3 [shape = 's32[1]{0}', space=sflag, size = 0x4, scoped, tag = 'scratch operand']
  #allocation4 [shape = 's32[1]{0}', space=sflag, size = 0x4, scoped, tag = 'scoped memory for _embedding_lookup.1']
  #allocation5 [shape = 'u8[2048]{0}', space=smem, size = 0x800, scoped, tag = 'prefetched SMEM operand 0']
  #allocation8 [shape = 's32[]', space=sflag, size = 0x4, offset = 0, fixed_abs, tag = 'sflag constant byte address 0x0 - dummy sync flag']
  #allocation9 [shape = 's32[]', space=sflag, size = 0x4, offset = 0, fixed_abs, tag = 'sflag constant byte address 0x0 - dummy sync flag']
  #allocation10 [shape = 'u32[]', space=smem, size = 0x4, offset = 0x44, fixed_abs, tag = 'smem constant byte address 0x44 - assertion arg 0']
  #allocation11 [shape = 'u32[]', space=smem, size = 0x4, offset = 0x48, fixed_abs, tag = 'smem constant byte address 0x48 - assertion arg 1']
  #allocation12 [shape = 's32[]', space=sflag, size = 0x4, offset = 0, fixed_abs, tag = 'sflag constant byte address 0x0 - dummy sync flag']
  #allocation13 [shape = 's32[]', space=sflag, size = 0x4, offset = 0, fixed_abs, tag = 'sflag constant byte address 0x0 - dummy sync flag']
  #allocation14 [shape = 's32[]', space=sflag, size = 0x4, offset = 0, fixed_abs, tag = 'sflag constant byte address 0x0 - dummy sync flag']
  #allocation15 [shape = 's32[]', space=sflag, size = 0x4, offset = 0, fixed_abs, tag = 'sflag constant byte address 0x0 - dummy sync flag']
  #allocation16 [shape = 's32[]', space=sflag, size = 0x4, offset = 0, fixed_abs, tag = 'sflag constant byte address 0x0 - dummy sync flag']
  #allocation17 [shape = 's32[]', space=sflag, size = 0x4, offset = 0, fixed_abs, tag = 'sflag constant byte address 0x0 - dummy sync flag']
  #allocation18 [shape = 's32[]', space=sflag, size = 0x4, offset = 0, fixed_abs, tag = 'sflag constant byte address 0x0 - dummy sync flag']
  #allocation19 [shape = 's32[]', space=sflag, size = 0x4, offset = 0, fixed_abs, tag = 'sflag constant byte address 0x0 - dummy sync flag']
  #allocation20 [shape = 's32[]', space=sflag, size = 0x4, offset = 0, fixed_abs, tag = 'sflag constant byte address 0x0 - dummy sync flag']
  #allocation21 [shape = 's32[]', space=sflag, size = 0x4, offset = 0, fixed_abs, tag = 'sflag constant byte address 0x0 - dummy sync flag']
  #allocation22 [shape = 's32[]', space=sflag, size = 0x4, offset = 0, fixed_abs, tag = 'sflag constant byte address 0x0 - dummy sync flag']
  #allocation23 [shape = 's32[]', space=sflag, size = 0x4, offset = 0, fixed_abs, tag = 'sflag constant byte address 0x0 - dummy sync flag']
  #allocation24 [shape = 's32[]', space=sflag, size = 0x4, offset = 0, fixed_abs, tag = 'sflag constant byte address 0x0 - dummy sync flag']
  #allocation25 [shape = 's32[]', space=sflag, size = 0x4, offset = 0, fixed_abs, tag = 'sflag constant byte address 0x0 - dummy sync flag']
  %s0 = inlined_call_operand.hbm [shape: s32[3,8], index: 0, kind: input, shape index: {}]
  %s1 = inlined_call_operand.hbm [shape: f32[4,256,128], index: 1, kind: input, shape index: {}]
  %s2 = inlined_call_operand.hbm [shape: f32[8,128], index: 2, kind: output, shape index: {}]
  %s3 = sld [smem:[#allocation0]]
  $region65: #{_embedding_lookup.1} parent=0
    _
  %s5 = ssub.s32 1, %s3
  %s6 = scalar_select 0, %s5, %s3
  %8 = dma.hbm_to_smem %s0, 64, [#allocation5], [#allocation4]
  %9 = dma.done [#allocation4], 64
  %10 = sfence
  $region1: #{_embedding_lookup.1} parent=0
    #allocation6 [shape = 'u8[4096]{0}', space=vmem, size = 0x1000, scoped, tag = 'output window, operand 0, single buffered']
    #allocation7 [shape = 's32[2]{0}', space=sflag, size = 0x8, scoped, tag = 'scoped memory for _embedding_lookup.1']
    %11 = vsyncpa [#allocation7], 0
    loop: start=0, step=1, limit=4
    $region2: #{_embedding_lookup.1} parent=1 // loop_pre_header
      _
    $region3: #{_embedding_lookup.1} parent=1 // loop_header
      %s13 = sphi 0, %s17
      %p14 = scmp.ge.s32.totalorder %s13, 4
      %s20 = sphi 0, %s20
      %s22 = sphi 0, %s20
      %s30 = sphi 0, %s22
    $region4: #{_embedding_lookup.1} parent=1 // loop_header_branch
      %16 = sbr.rel (%p14) target = $region8
    $region5: #{_embedding_lookup.1} parent=1 // loop_body
      %s18 = ssub.s32 %s13, 1
      %s19 = sadd.s32 %s13, 1
      %s21 = sadd.s32 %s20, 1
      %p23 = scmp.eq.s32.totalorder %s13, 2
      %p24 = scmp.ne.s32.totalorder %s20, %s22
      %p25 = scmp.eq.s32.totalorder %s13, 0
      %p26 = por %p24, %p25
      %p27 = scmp.ne.s32.totalorder %s20, %s22
      %p28 = scmp.eq.s32.totalorder %s18, 2
      %p29 = por %p27, %p28
      %p31 = scmp.ne.s32.totalorder %s22, %s30
      %p32 = scmp.eq.s32.totalorder %s18, 0
      %p33 = por %p31, %p32
      %p34 = scmp.lt.s32.totalorder %s13, 3
      // Predicated region
      $region9: #{_embedding_lookup.1} parent=5 // pred_check
        %p35 = pneg %p34
      $region10: #{_embedding_lookup.1} parent=5 // pred_check_branch
        %37 = sbr.rel (%p35) target = $region12
      $region11: #{_embedding_lookup.1} parent=5 // pred_region
        %p38 = pneg %p26
        %p39 = pneg %p23
        %s40 = smul.u32 %s13, 128
        %s41 = sld [smem:[#allocation5 + %s40]]
        %s42 = smul.u32 %s13, 256
        %s43 = sadd.s32 %s41, %s42
        %s44 = smul.addr %s43, 16
        %s45 = scalar_lea.hbm %s1, %s44
        // Predicated region
        $region13: #{_embedding_lookup.1} parent=11 // pred_check
          _
        $region14: #{_embedding_lookup.1} parent=11 // pred_check_branch
          %47 = sbr.rel target = $region16
        $region15: #{_embedding_lookup.1} parent=11 // pred_region
          %48 = sst [smem:[#allocation10]] [#allocation9]
          %49 = sst [smem:[#allocation11]] [#allocation8]
        $region16: #{_embedding_lookup.1} parent=11 // pred_fallthru
          _
        %51 = shalt.err (0)
        %s53 = sshll.u32 [#allocation2], 4
        %s54 = int_to_ptr.vmem [resolvable:$true] %s53
        %56 = dma.hbm_to_vmem [thread:$0]  %s45, 16, %s54, [#allocation3]
        %s57 = sadd.s32 %s40, 1
        %s58 = sld [smem:[#allocation5 + %s57]]
        %s59 = sadd.s32 %s58, %s42
        %s60 = smul.addr %s59, 16
        %s61 = scalar_lea.hbm %s1, %s60
        %s62 = scalar_lea.vmem [#allocation2], 1
        // Predicated region
        $region17: #{_embedding_lookup.1} parent=11 // pred_check
          _
        $region18: #{_embedding_lookup.1} parent=11 // pred_check_branch
          %64 = sbr.rel target = $region20
        $region19: #{_embedding_lookup.1} parent=11 // pred_region
          %65 = sst [smem:[#allocation10]] [#allocation13]
          %66 = sst [smem:[#allocation11]] [#allocation12]
        $region20: #{_embedding_lookup.1} parent=11 // pred_fallthru
          _
        %68 = shalt.err (0)
        %s70 = sshll.u32 %s62, 4
        %s71 = int_to_ptr.vmem [resolvable:$true] %s70
        %73 = dma.hbm_to_vmem [thread:$0]  %s61, 16, %s71, [#allocation3]
        %s74 = sadd.s32 %s40, 2
        %s75 = sld [smem:[#allocation5 + %s74]]
        %s76 = sadd.s32 %s75, %s42
        %s77 = smul.addr %s76, 16
        %s78 = scalar_lea.hbm %s1, %s77
        %s79 = scalar_lea.vmem [#allocation2], 2
        // Predicated region
        $region21: #{_embedding_lookup.1} parent=11 // pred_check
          _
        $region22: #{_embedding_lookup.1} parent=11 // pred_check_branch
          %81 = sbr.rel target = $region24
        $region23: #{_embedding_lookup.1} parent=11 // pred_region
          %82 = sst [smem:[#allocation10]] [#allocation15]
          %83 = sst [smem:[#allocation11]] [#allocation14]
        $region24: #{_embedding_lookup.1} parent=11 // pred_fallthru
          _
        %85 = shalt.err (0)
        %s87 = sshll.u32 %s79, 4
        %s88 = int_to_ptr.vmem [resolvable:$true] %s87
        %90 = dma.hbm_to_vmem [thread:$0]  %s78, 16, %s88, [#allocation3]
        %s91 = sadd.s32 %s40, 3
        %s92 = sld [smem:[#allocation5 + %s91]]
        %s93 = sadd.s32 %s92, %s42
        %s94 = smul.addr %s93, 16
        %s95 = scalar_lea.hbm %s1, %s94
        %s96 = scalar_lea.vmem [#allocation2], 3
        // Predicated region
        $region25: #{_embedding_lookup.1} parent=11 // pred_check
          _
        $region26: #{_embedding_lookup.1} parent=11 // pred_check_branch
          %98 = sbr.rel target = $region28
        $region27: #{_embedding_lookup.1} parent=11 // pred_region
          %99 = sst [smem:[#allocation10]] [#allocation17]
          %100 = sst [smem:[#allocation11]] [#allocation16]
        $region28: #{_embedding_lookup.1} parent=11 // pred_fallthru
          _
        %102 = shalt.err (0)
        %s104 = sshll.u32 %s96, 4
        %s105 = int_to_ptr.vmem [resolvable:$true] %s104
        %107 = dma.hbm_to_vmem [thread:$0]  %s95, 16, %s105, [#allocation3]
        %s108 = sadd.s32 %s40, 4
        %s109 = sld [smem:[#allocation5 + %s108]]
        %s110 = sadd.s32 %s109, %s42
        %s111 = smul.addr %s110, 16
        %s112 = scalar_lea.hbm %s1, %s111
        %s113 = scalar_lea.vmem [#allocation2], 4
        // Predicated region
        $region29: #{_embedding_lookup.1} parent=11 // pred_check
          _
        $region30: #{_embedding_lookup.1} parent=11 // pred_check_branch
          %115 = sbr.rel target = $region32
        $region31: #{_embedding_lookup.1} parent=11 // pred_region
          %116 = sst [smem:[#allocation10]] [#allocation19]
          %117 = sst [smem:[#allocation11]] [#allocation18]
        $region32: #{_embedding_lookup.1} parent=11 // pred_fallthru
          _
        %119 = shalt.err (0)
        %s121 = sshll.u32 %s113, 4
        %s122 = int_to_ptr.vmem [resolvable:$true] %s121
        %124 = dma.hbm_to_vmem [thread:$0]  %s112, 16, %s122, [#allocation3]
        %s125 = sadd.s32 %s40, 5
        %s126 = sld [smem:[#allocation5 + %s125]]
        %s127 = sadd.s32 %s126, %s42
        %s128 = smul.addr %s127, 16
        %s129 = scalar_lea.hbm %s1, %s128
        %s130 = scalar_lea.vmem [#allocation2], 5
        // Predicated region
        $region33: #{_embedding_lookup.1} parent=11 // pred_check
          _
        $region34: #{_embedding_lookup.1} parent=11 // pred_check_branch
          %132 = sbr.rel target = $region36
        $region35: #{_embedding_lookup.1} parent=11 // pred_region
          %133 = sst [smem:[#allocation10]] [#allocation21]
          %134 = sst [smem:[#allocation11]] [#allocation20]
        $region36: #{_embedding_lookup.1} parent=11 // pred_fallthru
          _
        %136 = shalt.err (0)
        %s138 = sshll.u32 %s130, 4
        %s139 = int_to_ptr.vmem [resolvable:$true] %s138
        %141 = dma.hbm_to_vmem [thread:$0]  %s129, 16, %s139, [#allocation3]
        %s142 = sadd.s32 %s40, 6
        %s143 = sld [smem:[#allocation5 + %s142]]
        %s144 = sadd.s32 %s143, %s42
        %s145 = smul.addr %s144, 16
        %s146 = scalar_lea.hbm %s1, %s145
        %s147 = scalar_lea.vmem [#allocation2], 6
        // Predicated region
        $region37: #{_embedding_lookup.1} parent=11 // pred_check
          _
        $region38: #{_embedding_lookup.1} parent=11 // pred_check_branch
          %149 = sbr.rel target = $region40
        $region39: #{_embedding_lookup.1} parent=11 // pred_region
          %150 = sst [smem:[#allocation10]] [#allocation23]
          %151 = sst [smem:[#allocation11]] [#allocation22]
        $region40: #{_embedding_lookup.1} parent=11 // pred_fallthru
          _
        %153 = shalt.err (0)
        %s155 = sshll.u32 %s147, 4
        %s156 = int_to_ptr.vmem [resolvable:$true] %s155
        %158 = dma.hbm_to_vmem [thread:$0]  %s146, 16, %s156, [#allocation3]
        %s159 = sadd.s32 %s40, 7
        %s160 = sld [smem:[#allocation5 + %s159]]
        %s161 = sadd.s32 %s160, %s42
        %s162 = smul.addr %s161, 16
        %s163 = scalar_lea.hbm %s1, %s162
        %s164 = scalar_lea.vmem [#allocation2], 7
        // Predicated region
        $region41: #{_embedding_lookup.1} parent=11 // pred_check
          _
        $region42: #{_embedding_lookup.1} parent=11 // pred_check_branch
          %166 = sbr.rel target = $region44
        $region43: #{_embedding_lookup.1} parent=11 // pred_region
          %167 = sst [smem:[#allocation10]] [#allocation25]
          %168 = sst [smem:[#allocation11]] [#allocation24]
        $region44: #{_embedding_lookup.1} parent=11 // pred_fallthru
          _
        %170 = shalt.err (0)
        %s172 = sshll.u32 %s164, 4
        %s173 = int_to_ptr.vmem [resolvable:$true] %s172
        %175 = dma.hbm_to_vmem [thread:$0]  %s163, 16, %s173, [#allocation3]
        %s176 = smul.u32 1, 1
        %s177 = sshll.u32 %s176, 4
        %178 = dma.done [#allocation3], %s177
        %s179 = sshll.u32 %s176, 4
        %180 = dma.done [#allocation3], %s179
        %s181 = sshll.u32 %s176, 4
        %182 = dma.done [#allocation3], %s181
        %s183 = sshll.u32 %s176, 4
        %184 = dma.done [#allocation3], %s183
        %s185 = sshll.u32 %s176, 4
        %186 = dma.done [#allocation3], %s185
        %s187 = sshll.u32 %s176, 4
        %188 = dma.done [#allocation3], %s187
        %s189 = sshll.u32 %s176, 4
        %190 = dma.done [#allocation3], %s189
        %s191 = sshll.u32 %s176, 4
        %192 = dma.done [#allocation3], %s191
        %p193 = scmp.eq.s32.totalorder %s13, 0
        // Predicated region
        $region45: #{_embedding_lookup.1} parent=11 // pred_check
          %p194 = pneg %p193
        $region46: #{_embedding_lookup.1} parent=11 // pred_check_branch
          %196 = sbr.rel (%p194) target = $region48
        $region47: #{_embedding_lookup.1} parent=11 // pred_region
          %v197 = vld [vmem:[#allocation2] sm:$0xff]
          %198 = vst [vmem:[#allocation6] sm:$0xff] %v197
        $region48: #{_embedding_lookup.1} parent=11 // pred_fallthru
          _
        %p199 = scmp.gt.s32.totalorder %s13, 0
        // Predicated region
        $region49: #{_embedding_lookup.1} parent=11 // pred_check
          %p200 = pneg %p199
        $region50: #{_embedding_lookup.1} parent=11 // pred_check_branch
          %202 = sbr.rel (%p200) target = $region52
        $region51: #{_embedding_lookup.1} parent=11 // pred_region
          %v203 = vld [vmem:[#allocation6] sm:$0xff]
          %v204 = vld [vmem:[#allocation2] sm:$0xff]
          %v205 = vadd.f32 %v203, %v204
          %206 = vst [vmem:[#allocation6] sm:$0xff] %v205
        $region52: #{_embedding_lookup.1} parent=11 // pred_fallthru
          _
        // Predicated region
        $region53: #{_embedding_lookup.1} parent=11 // pred_check
          %p207 = pneg %p23
        $region54: #{_embedding_lookup.1} parent=11 // pred_check_branch
          %209 = sbr.rel (%p207) target = $region56
        $region55: #{_embedding_lookup.1} parent=11 // pred_region
          %s211 = ssub.s32 128, 128
          %212 = vsyncadd [#allocation7], %s211
          %s214 = sshll.u32 [#allocation6], 4
          %s215 = int_to_ptr.vmem [resolvable:$true] %s214
          %217 = dma.vmem_to_hbm [thread:$0]  %s215, 128, %s2, [#allocation7]
        $region56: #{_embedding_lookup.1} parent=11 // pred_fallthru
          _
        // Predicated region
        $region57: #{_embedding_lookup.1} parent=11 // pred_check
          %p218 = pneg %p23
        $region58: #{_embedding_lookup.1} parent=11 // pred_check_branch
          %220 = sbr.rel (%p218) target = $region60
        $region59: #{_embedding_lookup.1} parent=11 // pred_region
          %221 = dma.done [#allocation7], 128
        $region60: #{_embedding_lookup.1} parent=11 // pred_fallthru
          _
      $region12: #{_embedding_lookup.1} parent=5 // pred_fallthru
        _
      %p222 = scmp.le.s32.totalorder 1, %s13
      // Predicated region
      $region61: #{_embedding_lookup.1} parent=5 // pred_check
        %p223 = pneg %p222
      $region62: #{_embedding_lookup.1} parent=5 // pred_check_branch
        %225 = sbr.rel (%p223) target = $region64
      $region63: #{_embedding_lookup.1} parent=5 // pred_region
        %s226 = ssub.s32 %s13, 1
      $region64: #{_embedding_lookup.1} parent=5 // pred_fallthru
        _
    $region6: #{_embedding_lookup.1} parent=1 // loop_footer
      %s17 = sadd.s32 1, %s13
    $region7: #{_embedding_lookup.1} parent=1 // loop_footer_branch
      %12 = sbr.rel target = $region3
    $region8: #{_embedding_lookup.1} parent=1 // loop_exit
      _
    %227 = vsyncpa [#allocation7], 1
    %s228 = scalar_lea.sflag [#allocation7], 1
    %229 = vsyncpa %s228, 1
  %230 = vsyncmov [#allocation3]
  %s231 = vpop.sfrf %230
  %p232 = scmp.eq.s32.totalorder %s231, 0
  %p233 = pneg %p232
  %235 = shalt.err (%p233)

</llo_original>
